<compile_context>
chip_gen: v7x
topology: tpu7x:2x2x1
jax: 0.10.0
libtpu: 0.0.40
codegen_flags: <defaults>
</compile_context>

<pallas_src>
import math

import jax
import jax.numpy as jnp
from jax.experimental import pallas as pl
from jax.experimental.pallas import tpu as pltpu

_LANES = 128          # lane width (points per row)
_TILE_R = 512         # sublane rows per grid step (512*128 = 65,536 points)
_FAST_PATH_N = 8192   # below this, pure-JAX beats launch + pad + transpose


def _round_up(x: int, m: int) -> int:
    return ((x + m - 1) // m) * m


def _sdf_disk_kernel(radius_ref, x_ref, o_ref):
    # radius_ref: SMEM (1,) f32
    # x_ref     : VMEM (3, tile_r, 128) f32  -- channels (x0, x1, x2), dense slabs
    # o_ref     : VMEM (tile_r, 128) f32
    x0 = x_ref[0]
    x1 = x_ref[1]
    x2 = x_ref[2]
    r_dist = jnp.sqrt(x1 * x1 + x2 * x2) - radius_ref[0]
    # match torch's `r_dist.where(r_dist > 0.0, 0.0)` exactly
    r_clamped = jnp.where(r_dist > 0.0, r_dist, 0.0)
    o_ref[...] = jnp.sqrt(x0 * x0 + r_clamped * r_clamped)


def _sdf_disk_ref(query_positions, radius):
    """Pure-JAX reference (also the small-N fast path)."""
    x = query_positions.astype(jnp.float32)
    r = jnp.asarray(radius, jnp.float32)
    r_dist = jnp.linalg.norm(x[..., 1:3], axis=-1, keepdims=True) - r
    r_clamped = jnp.where(r_dist > 0.0, r_dist, 0.0)
    stacked = jnp.concatenate([x[..., 0:1], r_clamped], axis=-1)
    return jnp.linalg.norm(stacked, axis=-1, keepdims=True)


def sdf_disk(query_positions: jax.Array, radius, *,
             force_pallas: bool = False) -> jax.Array:
    """query_positions: [..., 3] -> distance: [..., 1] (same dtype as input)."""
    assert query_positions.shape[-1] == 3
    orig_dtype = query_positions.dtype
    lead_shape = query_positions.shape[:-1]
    n = math.prod(lead_shape) if lead_shape else 1

    if n == 0:
        return jnp.zeros((*lead_shape, 1), orig_dtype)

    # Small-N fast path: XLA fuses this into a couple of ops; launching the
    # Pallas kernel (plus pad/transpose) would be pure overhead here.
    if n < _FAST_PATH_N and not force_pallas:
        return _sdf_disk_ref(query_positions, radius).astype(orig_dtype)

    x = query_positions.reshape(n, 3).astype(jnp.float32)

    # Pad points only to a whole multiple of 8 rows x 128 lanes (<= 1023 extra
    # points).  The grid may end with a partial block; Pallas clamps the
    # DMA to the array bounds, and since the map is purely elementwise this is
    # exact (padded lanes compute sqrt(0) = 0 and are sliced off below).
    rows = pl.cdiv(n, _LANES)
    rows_pad = _round_up(rows, 8)
    tile_r = min(_TILE_R, rows_pad)               # multiple of 8, <= _TILE_R
    n_pad = rows_pad * _LANES

    # Channels-first, sublane+lane dense: (3, rows_pad, 128).
    x = jnp.pad(x, ((0, n_pad - n), (0, 0)))
    x_t = x.T.reshape(3, rows_pad, _LANES)

    radius_smem = jnp.asarray(radius, jnp.float32).reshape(1)

    grid = (pl.cdiv(rows_pad, tile_r),)
    out = pl.pallas_call(
        _sdf_disk_kernel,
        out_shape=jax.ShapeDtypeStruct((rows_pad, _LANES), jnp.float32),
        grid=grid,
        in_specs=[
            pl.BlockSpec(memory_space=pltpu.MemorySpace.SMEM),            # radius
            pl.BlockSpec((3, tile_r, _LANES), lambda i: (0, i, 0)),       # x
        ],
        out_specs=pl.BlockSpec((tile_r, _LANES), lambda i: (i, 0)),
        compiler_params=pltpu.CompilerParams(
            dimension_semantics=("parallel",),
        ),
    )(radius_smem, x_t)

    sd = out.reshape(n_pad)[:n].reshape(*lead_shape, 1)
    return sd.astype(orig_dtype)


if __name__ == "__main__":
    key = jax.random.PRNGKey(0)
    # Deterministic "parameter" init (nn.Parameter(torch.tensor(radius))).
    radius = jnp.float32(0.75)

    k_small, k_odd, k_big = jax.random.split(key, 3)

    # 1) Small demo shape [batch=2, num_points=16, 3]: exercise the Pallas
    #    kernel itself (single block, heavy lane padding).
    query_small = jax.random.normal(k_small, (2, 16, 3), dtype=jnp.float32)
    out_small = jax.block_until_ready(sdf_disk(query_small, radius,
                                               force_pallas=True))
    ref_small = _sdf_disk_ref(query_small, radius)
    assert out_small.shape == (2, 16, 1), out_small.shape
    assert jnp.allclose(out_small, ref_small, atol=1e-5, rtol=1e-5), (
        float(jnp.max(jnp.abs(out_small - ref_small))))

    # 2) Default dispatch at the small shape takes the fast path; same result.
    out_fast = jax.block_until_ready(sdf_disk(query_small, radius))
    assert jnp.allclose(out_fast, ref_small, atol=1e-5, rtol=1e-5)

    # 3) Odd, non-128-aligned point count -> exercises the row-padding path.
    query_odd = jax.random.normal(k_odd, (3, 1111, 3), dtype=jnp.float32)
    out_odd = jax.block_until_ready(sdf_disk(query_odd, radius,
                                             force_pallas=True))
    ref_odd = _sdf_disk_ref(query_odd, radius)
    assert out_odd.shape == (3, 1111, 1), out_odd.shape
    assert jnp.allclose(out_odd, ref_odd, atol=1e-5, rtol=1e-5), (
        float(jnp.max(jnp.abs(out_odd - ref_odd))))

    # 4) Medium batch -> multi-block grid with a partial last block.
    query_big = jax.random.normal(k_big, (4, 20000, 3), dtype=jnp.float32)
    out_big = jax.block_until_ready(sdf_disk(query_big, radius))
    ref_big = _sdf_disk_ref(query_big, radius)
    assert out_big.shape == (4, 20000, 1), out_big.shape
    assert jnp.allclose(out_big, ref_big, atol=1e-5, rtol=1e-5), (
        float(jnp.max(jnp.abs(out_big - ref_big))))

    print("KERNEL_OK")
</pallas_src>

<mosaic_0001>
module attributes {stable_mosaic.version = 11 : i64} {
  func.func @_sdf_disk_kernel(%arg0: i32, %arg1: memref<1xf32, #tpu.memory_space<smem>>, %arg2: memref<3x8x128xf32, #tpu.memory_space<vmem>>, %arg3: memref<8x128xf32, #tpu.memory_space<vmem>>) attributes {dimension_semantics = [#tpu.dimension_semantics<parallel>], iteration_bounds = array<i64: 1>, scalar_prefetch = 0 : i64, scratch_operands = 0 : i64, tpu.core_type = #tpu.core_type<tc>, window_params = [{transform_indices = @transform_0, window_bounds = array<i64: 1>}, {transform_indices = @transform_1, window_bounds = array<i64: 3, 8, 128>}, {transform_indices = @transform_2, window_bounds = array<i64: 8, 128>}]} {
    %c0 = arith.constant 0 : index
    %c0_0 = arith.constant 0 : index
    %c0_1 = arith.constant 0 : index
    %0 = vector.load %arg2[%c0, %c0_0, %c0_1] : memref<3x8x128xf32, #tpu.memory_space<vmem>>, vector<1x8x128xf32>
    %1 = vector.shape_cast %0 : vector<1x8x128xf32> to vector<8x128xf32>
    %c1 = arith.constant 1 : index
    %c0_2 = arith.constant 0 : index
    %c0_3 = arith.constant 0 : index
    %2 = vector.load %arg2[%c1, %c0_2, %c0_3] : memref<3x8x128xf32, #tpu.memory_space<vmem>>, vector<1x8x128xf32>
    %3 = vector.shape_cast %2 : vector<1x8x128xf32> to vector<8x128xf32>
    %c2 = arith.constant 2 : index
    %c0_4 = arith.constant 0 : index
    %c0_5 = arith.constant 0 : index
    %4 = vector.load %arg2[%c2, %c0_4, %c0_5] : memref<3x8x128xf32, #tpu.memory_space<vmem>>, vector<1x8x128xf32>
    %5 = vector.shape_cast %4 : vector<1x8x128xf32> to vector<8x128xf32>
    %6 = arith.mulf %3, %3 : vector<8x128xf32>
    %7 = arith.mulf %5, %5 : vector<8x128xf32>
    %8 = arith.addf %6, %7 : vector<8x128xf32>
    %9 = math.sqrt %8 : vector<8x128xf32>
    %c0_6 = arith.constant 0 : index
    %10 = memref.load %arg1[%c0_6] : memref<1xf32, #tpu.memory_space<smem>>
    %11 = vector.broadcast %10 : f32 to vector<8x128xf32>
    %12 = arith.subf %9, %11 : vector<8x128xf32>
    %cst = arith.constant 0.000000e+00 : f32
    %13 = vector.broadcast %cst : f32 to vector<8x128xf32>
    %14 = arith.cmpf ogt, %12, %13 : vector<8x128xf32>
    %cst_7 = arith.constant 0.000000e+00 : f32
    %15 = vector.broadcast %cst_7 : f32 to vector<8x128xf32>
    %16 = arith.select %14, %12, %15 : vector<8x128xi1>, vector<8x128xf32>
    %17 = arith.mulf %1, %1 : vector<8x128xf32>
    %18 = arith.mulf %16, %16 : vector<8x128xf32>
    %19 = arith.addf %17, %18 : vector<8x128xf32>
    %20 = math.sqrt %19 : vector<8x128xf32>
    %c0_8 = arith.constant 0 : index
    %c0_9 = arith.constant 0 : index
    %21 = vector.load %arg3[%c0_8, %c0_9] : memref<8x128xf32, #tpu.memory_space<vmem>>, vector<8x128xf32>
    tpu.vector_store %arg3[%c0_8, %c0_9], %20 {strides = array<i32>} : memref<8x128xf32, #tpu.memory_space<vmem>>, vector<8x128xf32>,
    return
  }
  func.func @transform_0(%arg0: i32) -> i32 {
    %c0_i32 = arith.constant 0 : i32
    %c0_i32_0 = arith.constant 0 : i32
    return %c0_i32 : i32
  }
  func.func @transform_1(%arg0: i32) -> (i32, i32, i32) {
    %c0_i32 = arith.constant 0 : i32
    %c0_i32_0 = arith.constant 0 : i32
    %c0_i32_1 = arith.constant 0 : i32
    return %c0_i32, %arg0, %c0_i32_0 : i32, i32, i32
  }
  func.func @transform_2(%arg0: i32) -> (i32, i32) {
    %c0_i32 = arith.constant 0 : i32
    %c0_i32_0 = arith.constant 0 : i32
    return %arg0, %c0_i32 : i32, i32
  }
}

</mosaic_0001>

<llo_original>
// kernel: tpu_custom_call.1
$region0: #{tpu_custom_call.1}
  #allocation0 [shape = 'u32[]', space=smem, size = 0x4, offset = 0x4, fixed_abs, tag = 'smem constant byte address 0x4 - core index']
  #allocation1 [shape = 'u32[144,128]{1,0:T(1,128)}', space=vmem, size = 0x12000, scoped, tag = 'internal scratch']
  #allocation2 [shape = 'f32[1]{0:T(128)S(6)}', space=smem, size = 0x200, scoped, tag = 'scoped memory for tpu_custom_call.1']
  %s0 = inlined_call_operand.<no memory space> [shape: f32[1], index: 0, kind: input, shape index: {}]
  %s1 = inlined_call_operand.hbm [shape: f32[3,8,128], index: 1, kind: input, shape index: {}]
  %s2 = inlined_call_operand.hbm [shape: f32[8,128], index: 2, kind: output, shape index: {}]
  %s3 = sld [smem:[#allocation0]]
  $region22: #{tpu_custom_call.1} parent=0
    _
  %s5 = ssub.s32 1, %s3
  %s6 = scalar_select 0, %s5, %s3
  %7 = sst [smem:[#allocation2]] %s0
  $region1: #{tpu_custom_call.1} parent=0
    #allocation3 [shape = 'u8[12288]{0}', space=vmem, size = 0x3000, scoped, tag = 'input window, operand 1, single buffered']
    #allocation4 [shape = 's32[1]{0}', space=sflag, size = 0x4, scoped, tag = 'scoped memory for tpu_custom_call.1']
    #allocation5 [shape = 's32[1]{0}', space=sflag, size = 0x4, scoped, tag = 'scoped memory for tpu_custom_call.1']
    #allocation6 [shape = 'u8[4096]{0}', space=vmem, size = 0x1000, scoped, tag = 'output window, operand 0, single buffered']
    %8 = vsyncpa [#allocation4], 0
    %9 = vsyncpa [#allocation5], 0
    // Predicated region
    $region2: #{tpu_custom_call.1} parent=1 // pred_check
      _
    $region3: #{tpu_custom_call.1} parent=1 // pred_check_branch
      %11 = sbr.rel (0) target = $region5
    $region4: #{tpu_custom_call.1} parent=1 // pred_region
      _
    $region5: #{tpu_custom_call.1} parent=1 // pred_fallthru
      _
    // Predicated region
    $region6: #{tpu_custom_call.1} parent=1 // pred_check
      _
    $region7: #{tpu_custom_call.1} parent=1 // pred_check_branch
      %13 = sbr.rel (0) target = $region9
    $region8: #{tpu_custom_call.1} parent=1 // pred_region
      %s15 = ssub.s32 384, 384
      %16 = vsyncadd [#allocation4], %s15
      %s17 = sshll.u32 [#allocation3], 4
      %s18 = int_to_ptr.vmem [resolvable:$true] %s17
      %23 = dma.hbm_to_vmem [thread:$0]  %s1, 384, %s18, [#allocation4], 128, 128, 8
    $region9: #{tpu_custom_call.1} parent=1 // pred_fallthru
      _
    // Predicated region
    $region10: #{tpu_custom_call.1} parent=1 // pred_check
      _
    $region11: #{tpu_custom_call.1} parent=1 // pred_check_branch
      %25 = sbr.rel (0) target = $region13
    $region12: #{tpu_custom_call.1} parent=1 // pred_region
      %26 = dma.done [#allocation4], 384
    $region13: #{tpu_custom_call.1} parent=1 // pred_fallthru
      _
    %v27 = vld [vmem:[#allocation3] sm:$0xff]
    %s28 = scalar_lea.vmem [#allocation3], 8
    %v29 = vld [vmem:[%s28] sm:$0xff]
    %s30 = scalar_lea.vmem [#allocation3], 16
    %v31 = vld [vmem:[%s30] sm:$0xff]
    %v32 = vmul.f32 %v29, %v29
    %v33 = vmul.f32 %v31, %v31
    %v34 = vadd.f32 %v32, %v33
    %v35 = vrsqrt.pop %v34
    %v36 = vmul.f32 %v34, %v35
    %vm37 = vcmp.eq.f32.partialorder %v34, inf
    %v38 = vsel %vm37, %v34, %v36
    %vm39 = vcmp.eq.f32.partialorder %v34, 0.0
    %v40 = vand.u32 %v34, 2147483648
    %v41 = vsel %vm39, %v40, %v38
    %s42 = sld [smem:[#allocation2]]
    %v43 = vstv %s42
    %v44 = vsub.f32 %v41, %v43
    %vm45 = vcmp.gt.f32.partialorder %v44, 0.0
    %v46 = vsel %vm45, %v44, 0.0
    %v47 = vmul.f32 %v27, %v27
    %v48 = vmul.f32 %v46, %v46
    %v49 = vadd.f32 %v47, %v48
    %v50 = vrsqrt.pop %v49
    %v51 = vmul.f32 %v49, %v50
    %vm52 = vcmp.eq.f32.partialorder %v49, inf
    %v53 = vsel %vm52, %v49, %v51
    %vm54 = vcmp.eq.f32.partialorder %v49, 0.0
    %v55 = vand.u32 %v49, 2147483648
    %v56 = vsel %vm54, %v55, %v53
    %57 = vst [vmem:[#allocation6] sm:$0xff] %v56
    // Predicated region
    $region14: #{tpu_custom_call.1} parent=1 // pred_check
      _
    $region15: #{tpu_custom_call.1} parent=1 // pred_check_branch
      %59 = sbr.rel (0) target = $region17
    $region16: #{tpu_custom_call.1} parent=1 // pred_region
      %s61 = ssub.s32 128, 128
      %62 = vsyncadd [#allocation5], %s61
      %s64 = sshll.u32 [#allocation6], 4
      %s65 = int_to_ptr.vmem [resolvable:$true] %s64
      %67 = dma.vmem_to_hbm [thread:$0]  %s65, 128, %s2, [#allocation5]
    $region17: #{tpu_custom_call.1} parent=1 // pred_fallthru
      _
    // Predicated region
    $region18: #{tpu_custom_call.1} parent=1 // pred_check
      _
    $region19: #{tpu_custom_call.1} parent=1 // pred_check_branch
      %69 = sbr.rel (0) target = $region21
    $region20: #{tpu_custom_call.1} parent=1 // pred_region
      %70 = dma.done [#allocation5], 128
    $region21: #{tpu_custom_call.1} parent=1 // pred_fallthru
      _
    %71 = vsyncpa [#allocation4], 1
    %72 = vsyncpa [#allocation5], 1

</llo_original>
